<compile_context>
chip_gen: v7x
topology: tpu7x:2x2x1
jax: 0.10.0
libtpu: 0.0.40
codegen_flags: <defaults>
</compile_context>

<pallas_src>
import jax
import jax.numpy as jnp
from jax.experimental import pallas as pl
from jax.experimental.pallas import tpu as pltpu


def _round_up(n, m):
    return ((n + m - 1) // m) * m


def mlp_kernel(x_ref, w1_ref, b1_ref, w2_ref, b2_ref, o_ref):
    # Fused Linear -> Tanh -> Linear on one batch tile.
    # MXU matmuls accumulate in f32; bias add / tanh stay f32 (v5e-safe).
    x = x_ref[...]
    h = jnp.dot(x, w1_ref[...], preferred_element_type=jnp.float32) + b1_ref[...]
    h = jnp.tanh(h)
    y = jnp.dot(h.astype(w2_ref.dtype), w2_ref[...],
                preferred_element_type=jnp.float32) + b2_ref[...]
    o_ref[...] = y.astype(o_ref.dtype)


def prepare_params(w1, b1, w2, b2, compute_dtype=jnp.bfloat16):
    """One-time, call-invariant prep (hoisted out of the forward pass):
    cast weights to the MXU operand dtype, biases to f32 row vectors."""
    num_hidden = w1.shape[1]
    num_output = w2.shape[1]
    return (
        w1.astype(compute_dtype),
        jnp.reshape(b1, (1, num_hidden)).astype(jnp.float32),
        w2.astype(compute_dtype),
        jnp.reshape(b2, (1, num_output)).astype(jnp.float32),
    )


def model_net_forward(x, params, *, batch_block=512):
    """x: [B, num_input]; params = prepare_params(w1, b1, w2, b2).
    Returns [B, num_output] in x.dtype (== tanh(x @ W1 + b1) @ W2 + b2)."""
    w1, b1, w2, b2 = params
    B, num_input = x.shape
    num_hidden = w1.shape[1]
    num_output = w2.shape[1]
    out_dtype = x.dtype
    mm_dtype = w1.dtype

    # Sublane multiple for the compute dtype: 8 rows for f32, 16 for bf16.
    sub = max(8, 8 * (4 // jnp.dtype(mm_dtype).itemsize))

    # Batch tiling: large tiles for HBM-roofline efficiency, but aim for >= 2
    # grid steps when the batch allows so both v7x TensorCores get work.
    B_sub = _round_up(B, sub)
    bb_cap = _round_up(max(batch_block, sub), sub)
    if B_sub >= 2 * sub:
        half = _round_up(-(-B_sub // 2), sub)  # ceil(B_sub / 2), sublane-rounded
        bb = min(bb_cap, half)
    else:
        bb = B_sub
    B_pad = _round_up(B_sub, bb)

    # Only the batch dim is padded; feature dims stay native (full-extent block
    # dims are exempt from the (8,128) rule). Padded batch rows are sliced off.
    if B_pad != B:
        xp = jnp.zeros((B_pad, num_input), mm_dtype).at[:B].set(x.astype(mm_dtype))
    else:
        xp = x.astype(mm_dtype)  # no-op if x is already in the compute dtype

    grid = (B_pad // bb,)
    out_padded = pl.pallas_call(
        mlp_kernel,
        out_shape=jax.ShapeDtypeStruct((B_pad, num_output), out_dtype),
        grid_spec=pltpu.PrefetchScalarGridSpec(
            num_scalar_prefetch=0,
            grid=grid,
            in_specs=[
                # Batch-tiled activations; lane dim = full num_input (no K pad).
                pl.BlockSpec((bb, num_input), lambda i: (i, 0)),
                # Weights / biases: full-extent blocks + constant index_maps ->
                # DMA'd once, VMEM-resident across all grid steps.
                pl.BlockSpec((num_input, num_hidden), lambda i: (0, 0)),
                pl.BlockSpec((1, num_hidden), lambda i: (0, 0)),
                pl.BlockSpec((num_hidden, num_output), lambda i: (0, 0)),
                pl.BlockSpec((1, num_output), lambda i: (0, 0)),
            ],
            out_specs=pl.BlockSpec((bb, num_output), lambda i: (i, 0)),
        ),
        compiler_params=pltpu.CompilerParams(
            # Independent batch tiles -> shard across TensorCores (megacore/v7x).
            dimension_semantics=("parallel",),
            # Tiny footprint here; 32 MiB leaves headroom on v7x's 64 MiB VMEM.
            vmem_limit_bytes=32 * 1024 * 1024,
        ),
    )(xp, w1, b1, w2, b2)

    return out_padded[:B] if B_pad != B else out_padded


def init_params(key, num_input, num_hidden, num_output, dtype=jnp.float32):
    # Deterministic init mimicking nn.Linear's uniform(-1/sqrt(fan_in), 1/sqrt(fan_in)).
    k1, k2, k3, k4 = jax.random.split(key, 4)
    lim1 = 1.0 / jnp.sqrt(num_input)
    lim2 = 1.0 / jnp.sqrt(num_hidden)
    w1 = jax.random.uniform(k1, (num_input, num_hidden), dtype, -lim1, lim1)
    b1 = jax.random.uniform(k2, (1, num_hidden), dtype, -lim1, lim1)
    w2 = jax.random.uniform(k3, (num_hidden, num_output), dtype, -lim2, lim2)
    b2 = jax.random.uniform(k4, (1, num_output), dtype, -lim2, lim2)
    return w1, b1, w2, b2


if __name__ == "__main__":
    key = jax.random.PRNGKey(0)
    kx, kp = jax.random.split(key)

    batch = 8
    num_input, num_hidden, num_output = 32, 64, 16

    x = jax.random.normal(kx, (batch, num_input), dtype=jnp.float32)
    w1, b1, w2, b2 = init_params(kp, num_input, num_hidden, num_output)

    # Reference (same semantics as the PyTorch module, weights stored [in, out]).
    ref = jnp.tanh(x @ w1 + b1) @ w2 + b2

    # Default path: bf16 MXU operands, f32 accumulation / bias / tanh.
    params_bf16 = prepare_params(w1, b1, w2, b2)
    out_bf16 = jax.block_until_ready(model_net_forward(x, params_bf16))
    assert out_bf16.shape == (batch, num_output)
    assert out_bf16.dtype == x.dtype
    assert jnp.allclose(out_bf16, ref, atol=5e-2, rtol=5e-2)

    # Full-precision path for a tight numerical check.
    params_f32 = prepare_params(w1, b1, w2, b2, compute_dtype=jnp.float32)
    out_f32 = jax.block_until_ready(model_net_forward(x, params_f32))
    assert out_f32.shape == (batch, num_output)
    assert jnp.allclose(out_f32, ref, atol=1e-5, rtol=1e-5)

    print("KERNEL_OK")
</pallas_src>

<mosaic_0001>
module attributes {stable_mosaic.version = 11 : i64} {
  func.func @mlp_kernel(%arg0: i32, %arg1: memref<16x32xbf16, #tpu.memory_space<vmem>>, %arg2: memref<32x64xbf16, #tpu.memory_space<vmem>>, %arg3: memref<1x64xf32, #tpu.memory_space<vmem>>, %arg4: memref<64x16xbf16, #tpu.memory_space<vmem>>, %arg5: memref<1x16xf32, #tpu.memory_space<vmem>>, %arg6: memref<16x16xf32, #tpu.memory_space<vmem>>) attributes {dimension_semantics = [#tpu.dimension_semantics<parallel>], iteration_bounds = array<i64: 1>, scalar_prefetch = 0 : i64, scratch_operands = 0 : i64, tpu.core_type = #tpu.core_type<tc>, window_params = [{transform_indices = @transform_0, window_bounds = array<i64: 16, 32>}, {pipeline_mode = #tpu.pipeline_mode<synchronous>, transform_indices = @transform_1, window_bounds = array<i64: 32, 64>}, {pipeline_mode = #tpu.pipeline_mode<synchronous>, transform_indices = @transform_2, window_bounds = array<i64: 1, 64>}, {pipeline_mode = #tpu.pipeline_mode<synchronous>, transform_indices = @transform_3, window_bounds = array<i64: 64, 16>}, {pipeline_mode = #tpu.pipeline_mode<synchronous>, transform_indices = @transform_4, window_bounds = array<i64: 1, 16>}, {transform_indices = @transform_5, window_bounds = array<i64: 16, 16>}]} {
    %c0 = arith.constant 0 : index
    %c0_0 = arith.constant 0 : index
    %0 = vector.load %arg1[%c0, %c0_0] : memref<16x32xbf16, #tpu.memory_space<vmem>>, vector<16x32xbf16>
    %c0_1 = arith.constant 0 : index
    %c0_2 = arith.constant 0 : index
    %1 = vector.load %arg2[%c0_1, %c0_2] : memref<32x64xbf16, #tpu.memory_space<vmem>>, vector<32x64xbf16>
    %cst = arith.constant dense<0.000000e+00> : vector<16x64xf32>
    %2 = tpu.matmul %0, %1, %cst {dimension_numbers = #tpu.dot_dimension_numbers<[1], [0], [0], [1], [0, 0, 1, 1], [], []>} : vector<16x32xbf16>, vector<32x64xbf16>, vector<16x64xf32> -> vector<16x64xf32>
    %c0_3 = arith.constant 0 : index
    %c0_4 = arith.constant 0 : index
    %3 = vector.load %arg3[%c0_3, %c0_4] : memref<1x64xf32, #tpu.memory_space<vmem>>, vector<1x64xf32>
    %4 = vector.broadcast %3 : vector<1x64xf32> to vector<16x64xf32>
    %5 = arith.addf %2, %4 : vector<16x64xf32>
    %6 = math.tanh %5 : vector<16x64xf32>
    %7 = arith.truncf %6 : vector<16x64xf32> to vector<16x64xbf16>
    %c0_5 = arith.constant 0 : index
    %c0_6 = arith.constant 0 : index
    %8 = vector.load %arg4[%c0_5, %c0_6] : memref<64x16xbf16, #tpu.memory_space<vmem>>, vector<64x16xbf16>
    %cst_7 = arith.constant dense<0.000000e+00> : vector<16x16xf32>
    %9 = tpu.matmul %7, %8, %cst_7 {dimension_numbers = #tpu.dot_dimension_numbers<[1], [0], [0], [1], [0, 0, 1, 1], [], []>} : vector<16x64xbf16>, vector<64x16xbf16>, vector<16x16xf32> -> vector<16x16xf32>
    %c0_8 = arith.constant 0 : index
    %c0_9 = arith.constant 0 : index
    %10 = vector.load %arg5[%c0_8, %c0_9] : memref<1x16xf32, #tpu.memory_space<vmem>>, vector<1x16xf32>
    %11 = vector.broadcast %10 : vector<1x16xf32> to vector<16x16xf32>
    %12 = arith.addf %9, %11 : vector<16x16xf32>
    %c0_10 = arith.constant 0 : index
    %c0_11 = arith.constant 0 : index
    %13 = vector.load %arg6[%c0_10, %c0_11] : memref<16x16xf32, #tpu.memory_space<vmem>>, vector<16x16xf32>
    tpu.vector_store %arg6[%c0_10, %c0_11], %12 {strides = array<i32>} : memref<16x16xf32, #tpu.memory_space<vmem>>, vector<16x16xf32>,
    return
  }
  func.func @transform_0(%arg0: i32) -> (i32, i32) {
    %c0_i32 = arith.constant 0 : i32
    %c0_i32_0 = arith.constant 0 : i32
    return %arg0, %c0_i32 : i32, i32
  }
  func.func @transform_1(%arg0: i32) -> (i32, i32) {
    %c0_i32 = arith.constant 0 : i32
    %c0_i32_0 = arith.constant 0 : i32
    %c0_i32_1 = arith.constant 0 : i32
    return %c0_i32, %c0_i32_0 : i32, i32
  }
  func.func @transform_2(%arg0: i32) -> (i32, i32) {
    %c0_i32 = arith.constant 0 : i32
    %c0_i32_0 = arith.constant 0 : i32
    %c0_i32_1 = arith.constant 0 : i32
    return %c0_i32, %c0_i32_0 : i32, i32
  }
  func.func @transform_3(%arg0: i32) -> (i32, i32) {
    %c0_i32 = arith.constant 0 : i32
    %c0_i32_0 = arith.constant 0 : i32
    %c0_i32_1 = arith.constant 0 : i32
    return %c0_i32, %c0_i32_0 : i32, i32
  }
  func.func @transform_4(%arg0: i32) -> (i32, i32) {
    %c0_i32 = arith.constant 0 : i32
    %c0_i32_0 = arith.constant 0 : i32
    %c0_i32_1 = arith.constant 0 : i32
    return %c0_i32, %c0_i32_0 : i32, i32
  }
  func.func @transform_5(%arg0: i32) -> (i32, i32) {
    %c0_i32 = arith.constant 0 : i32
    %c0_i32_0 = arith.constant 0 : i32
    return %arg0, %c0_i32 : i32, i32
  }
}

</mosaic_0001>

<llo_original>
// kernel: tpu_custom_call.1
$region0: #{tpu_custom_call.1}
  #allocation0 [shape = 'u32[]', space=smem, size = 0x4, offset = 0x4, fixed_abs, tag = 'smem constant byte address 0x4 - core index']
  #allocation1 [shape = 'u32[144,128]{1,0:T(1,128)}', space=vmem, size = 0x12000, scoped, tag = 'internal scratch']
  %s0 = inlined_call_operand.vmem [shape: bf16[16,32], index: 0, kind: input, shape index: {}]
  %s1 = inlined_call_operand.vmem [shape: bf16[32,64], index: 1, kind: input, shape index: {}]
  %s2 = inlined_call_operand.vmem [shape: f32[1,64], index: 2, kind: input, shape index: {}]
  %s3 = inlined_call_operand.vmem [shape: bf16[64,16], index: 3, kind: input, shape index: {}]
  %s4 = inlined_call_operand.vmem [shape: f32[1,16], index: 4, kind: input, shape index: {}]
  %s5 = inlined_call_operand.hbm [shape: f32[16,16], index: 5, kind: output, shape index: {}]
  %s6 = sld [smem:[#allocation0]]
  $region30: #{tpu_custom_call.1} parent=0
    _
  %s8 = ssub.s32 1, %s6
  %s9 = scalar_select 0, %s8, %s6
  $region1: #{tpu_custom_call.1} parent=0
    #allocation2 [shape = 'u8[8192]{0}', space=vmem, size = 0x2000, scoped, tag = 'output window, operand 0, single buffered']
    #allocation3 [shape = 's32[1]{0}', space=sflag, size = 0x4, scoped, tag = 'scoped memory for tpu_custom_call.1']
    %10 = vsyncpa [#allocation3], 0
    // Predicated region
    $region2: #{tpu_custom_call.1} parent=1 // pred_check
      _
    $region3: #{tpu_custom_call.1} parent=1 // pred_check_branch
      %12 = sbr.rel (0) target = $region5
    $region4: #{tpu_custom_call.1} parent=1 // pred_region
      _
    $region5: #{tpu_custom_call.1} parent=1 // pred_fallthru
      _
    // Predicated region
    $region6: #{tpu_custom_call.1} parent=1 // pred_check
      _
    $region7: #{tpu_custom_call.1} parent=1 // pred_check_branch
      %14 = sbr.rel (0) target = $region9
    $region8: #{tpu_custom_call.1} parent=1 // pred_region
      _
    $region9: #{tpu_custom_call.1} parent=1 // pred_fallthru
      _
    // Predicated region
    $region10: #{tpu_custom_call.1} parent=1 // pred_check
      _
    $region11: #{tpu_custom_call.1} parent=1 // pred_check_branch
      %16 = sbr.rel (0) target = $region13
    $region12: #{tpu_custom_call.1} parent=1 // pred_region
      _
    $region13: #{tpu_custom_call.1} parent=1 // pred_fallthru
      _
    // Predicated region
    $region14: #{tpu_custom_call.1} parent=1 // pred_check
      _
    $region15: #{tpu_custom_call.1} parent=1 // pred_check_branch
      %18 = sbr.rel (0) target = $region17
    $region16: #{tpu_custom_call.1} parent=1 // pred_region
      _
    $region17: #{tpu_custom_call.1} parent=1 // pred_fallthru
      _
    // Predicated region
    $region18: #{tpu_custom_call.1} parent=1 // pred_check
      _
    $region19: #{tpu_custom_call.1} parent=1 // pred_check_branch
      %20 = sbr.rel (0) target = $region21
    $region20: #{tpu_custom_call.1} parent=1 // pred_region
      _
    $region21: #{tpu_custom_call.1} parent=1 // pred_fallthru
      _
    %v22 = vld [vmem:[%s0] sm:$0xf]
    %v23 = vld [vmem:[%s0 + $0x4] sm:$0xf]
    %v24 = vld [vmem:[%s1] sm:$0xf]
    %v25 = vld [vmem:[%s1 + $0x4] sm:$0xf]
    %v26 = vld [vmem:[%s1 + $0x8] sm:$0xf]
    %v27 = vld [vmem:[%s1 + $0xc] sm:$0xf]
    %v28 = vld [vmem:[%s2] sm:$0x1]
    %v30 = vlaneseq
    %v31 = vshrl.u32 %v30, 7
    %v32 = vsub.s32 0, %v31
    %v33 = vrot.slane %v28, %v32
    %v37 = vunpack.c.l.b16 %v22
    %v38 = vunpack.c.l.b16 %v23
    %v39 = vpack.c.b16 %v38, %v37
    %v44 = vunpack.c.l.b16 %v24
    %v45 = vunpack.c.l.b16 %v25
    %v46 = vunpack.c.l.b16 %v26
    %v47 = vunpack.c.l.b16 %v27
    %v48 = vpack.c.b16 %v45, %v44
    %v49 = vpack.c.b16 %v47, %v46
    %vm52 = vcmask 261120
    %v54 = vsel %vm52, %v39, 0
    %56 = vmatprep.subr.bf16.mxu0 0
    %57 = vmatpush1.bf16.msra.mxu0 %v48
    %58 = vmatprep.subr.bf16.mxu0 0
    %59 = vmatpush1.bf16.msra.mxu0 %v49
    %60 = vmatprep.subr.bf16.mxu0 0
    %61 = vmatpush1.bf16.msra.mxu0 0
    %62 = vmatprep.subr.bf16.mxu0 0
    %63 = vmatpush1.bf16.msra.mxu0 0
    %64 = vmatprep.subr.bf16.mxu0 0
    %65 = vmatpush1.bf16.msra.mxu0 0
    %66 = vmatprep.subr.bf16.mxu0 0
    %67 = vmatpush1.bf16.msra.mxu0 0
    %68 = vmatprep.subr.bf16.mxu0 0
    %69 = vmatpush1.bf16.msra.mxu0 0
    %70 = vmatprep.subr.bf16.mxu0 0
    %71 = vmatpush1.bf16.msra.mxu0 0
    %72 = vmatprep.subr.bf16.mxu0 0
    %73 = vmatpush1.bf16.msra.mxu0 0
    %74 = vmatprep.subr.bf16.mxu0 0
    %75 = vmatpush1.bf16.msra.mxu0 0
    %76 = vmatprep.subr.bf16.mxu0 0
    %77 = vmatpush1.bf16.msra.mxu0 0
    %78 = vmatprep.subr.bf16.mxu0 0
    %79 = vmatpush1.bf16.msra.mxu0 0
    %80 = vmatprep.subr.bf16.mxu0 0
    %81 = vmatpush1.bf16.msra.mxu0 0
    %82 = vmatprep.subr.bf16.mxu0 0
    %83 = vmatpush1.bf16.msra.mxu0 0
    %84 = vmatprep.subr.bf16.mxu0 0
    %85 = vmatpush1.bf16.msra.mxu0 0
    %86 = vmatprep.subr.bf16.mxu0 0
    %87 = vmatpush1.bf16.msra.mxu0 0
    %88 = vmatprep.mubr.bf16.mxu0 0
    %89 = vmatmul.mubr.bf16.gmra.mrb[0].mxu0 %v54
    %v90 = vpop.f32.mrb[0].mxu0
    %v91 = vadd.f32 %v33, %v90
    %v92 = vpop.f32.mrb[0].mxu0
    %v93 = vpop.f32.mrb[0].mxu0
    %v94 = vadd.f32 %v33, %v93
    %v95 = vpop.f32.mrb[0].mxu0
    %96 = vdwg.mxu0
    %v97 = vtanh.pop %v91
    %v98 = vtanh.pop %v94
    %v99 = vpack.c.bf16 %v98, %v97
    %v100 = vld [vmem:[%s3] sm:$0xf]
    %v101 = vld [vmem:[%s3 + $0x4] sm:$0xf]
    %v102 = vld [vmem:[%s3 + $0x8] sm:$0xf]
    %v103 = vld [vmem:[%s3 + $0xc] sm:$0xf]
    %v104 = vld [vmem:[%s3 + $0x10] sm:$0xf]
    %v105 = vld [vmem:[%s3 + $0x14] sm:$0xf]
    %v106 = vld [vmem:[%s3 + $0x18] sm:$0xf]
    %v107 = vld [vmem:[%s3 + $0x1c] sm:$0xf]
    %v108 = vld [vmem:[%s4] sm:$0x1]
    %v110 = vlaneseq
    %v111 = vshrl.u32 %v110, 7
    %v112 = vsub.s32 0, %v111
    %v113 = vrot.slane %v108, %v112
    %v123 = vunpack.c.l.b16 %v100
    %v124 = vunpack.c.l.b16 %v101
    %v125 = vunpack.c.l.b16 %v102
    %v126 = vunpack.c.l.b16 %v103
    %v127 = vunpack.c.l.b16 %v104
    %v128 = vunpack.c.l.b16 %v105
    %v129 = vunpack.c.l.b16 %v106
    %v130 = vunpack.c.l.b16 %v107
    %v131 = vpack.c.b16 %v124, %v123
    %v132 = vpack.c.b16 %v126, %v125
    %v133 = vpack.c.b16 %v128, %v127
    %v134 = vpack.c.b16 %v130, %v129
    %vm139 = vcmask 523264
    %v141 = vsel %vm139, %v99, 0
    %143 = vmatprep.subr.bf16.mxu0 0
    %144 = vmatpush1.bf16.msra.mxu0 %v131
    %145 = vmatprep.subr.bf16.mxu0 0
    %146 = vmatpush1.bf16.msra.mxu0 %v132
    %147 = vmatprep.subr.bf16.mxu0 0
    %148 = vmatpush1.bf16.msra.mxu0 %v133
    %149 = vmatprep.subr.bf16.mxu0 0
    %150 = vmatpush1.bf16.msra.mxu0 %v134
    %151 = vmatprep.subr.bf16.mxu0 0
    %152 = vmatpush1.bf16.msra.mxu0 0
    %153 = vmatprep.subr.bf16.mxu0 0
    %154 = vmatpush1.bf16.msra.mxu0 0
    %155 = vmatprep.subr.bf16.mxu0 0
    %156 = vmatpush1.bf16.msra.mxu0 0
    %157 = vmatprep.subr.bf16.mxu0 0
    %158 = vmatpush1.bf16.msra.mxu0 0
    %159 = vmatprep.subr.bf16.mxu0 0
    %160 = vmatpush1.bf16.msra.mxu0 0
    %161 = vmatprep.subr.bf16.mxu0 0
    %162 = vmatpush1.bf16.msra.mxu0 0
    %163 = vmatprep.subr.bf16.mxu0 0
    %164 = vmatpush1.bf16.msra.mxu0 0
    %165 = vmatprep.subr.bf16.mxu0 0
    %166 = vmatpush1.bf16.msra.mxu0 0
    %167 = vmatprep.subr.bf16.mxu0 0
    %168 = vmatpush1.bf16.msra.mxu0 0
    %169 = vmatprep.subr.bf16.mxu0 0
    %170 = vmatpush1.bf16.msra.mxu0 0
    %171 = vmatprep.subr.bf16.mxu0 0
    %172 = vmatpush1.bf16.msra.mxu0 0
    %173 = vmatprep.subr.bf16.mxu0 0
    %174 = vmatpush1.bf16.msra.mxu0 0
    %175 = vmatprep.mubr.bf16.mxu0 0
    %176 = vmatmul.mubr.bf16.gmra.mrb[0].mxu0 %v141
    %v177 = vpop.f32.mrb[0].mxu0
    %v178 = vadd.f32 %v113, %v177
    %v179 = vpop.f32.mrb[0].mxu0
    %v180 = vpop.f32.mrb[0].mxu0
    %v181 = vadd.f32 %v113, %v180
    %v182 = vpop.f32.mrb[0].mxu0
    %183 = vdwg.mxu0
    %vm184 = vcmask 130048
    %185 = vst.msk [vmem:[#allocation2] sm:$0xff] %vm184, %v178
    %186 = vst.msk [vmem:[#allocation2 + $0x8] sm:$0xff] %vm184, %v181
    // Predicated region
    $region22: #{tpu_custom_call.1} parent=1 // pred_check
      _
    $region23: #{tpu_custom_call.1} parent=1 // pred_check_branch
      %188 = sbr.rel (0) target = $region25
    $region24: #{tpu_custom_call.1} parent=1 // pred_region
      %s190 = ssub.s32 256, 256
      %191 = vsyncadd [#allocation3], %s190
      %s192 = sshll.u32 [#allocation2], 4
      %s193 = int_to_ptr.vmem [resolvable:$true] %s192
      %198 = dma.vmem_to_hbm [thread:$0]  %s193, 256, %s5, [#allocation3], 128, 128, 8
    $region25: #{tpu_custom_call.1} parent=1 // pred_fallthru
      _
    // Predicated region
    $region26: #{tpu_custom_call.1} parent=1 // pred_check
      _
    $region27: #{tpu_custom_call.1} parent=1 // pred_check_branch
      %200 = sbr.rel (0) target = $region29
    $region28: #{tpu_custom_call.1} parent=1 // pred_region
      %201 = dma.done [#allocation3], 256
    $region29: #{tpu_custom_call.1} parent=1 // pred_fallthru
      _
    %202 = vsyncpa [#allocation3], 1

</llo_original>
